<compile_context>
chip_gen: v5e
topology: v5e:2x2
jax: 0.10.0
libtpu: 0.0.40
codegen_flags: <defaults>
</compile_context>

<pallas_src>
import jax
import jax.numpy as jnp
from jax.experimental import pallas as pl
from jax.experimental.pallas import tpu as pltpu


def _round_up(x, m):
    return ((x + m - 1) // m) * m


def _fused_seqlabel_kernel(ids_ref, mask_ref, emb_ref, w_ref, b_ref, o_ref, acc_ref):
    """One (row-tile i, embed-slice k) grid step.

    ids_ref:  (tm, 1)  int32   token ids for this row tile
    mask_ref: (tm, 1)  int32   attention mask for this row tile
    emb_ref:  (Vp, tk) bf16    embedding table, embedding-dim slice k
    w_ref:    (tk, Tp) bf16    projection weight, embedding-dim slice k
    b_ref:    (1, Tp)  f32     bias (applied on the last K step only)
    o_ref:    (tm, Tp) f32     output tile (written on the last K step only)
    acc_ref:  (tm, Tp) f32     VMEM accumulator, resident across the K axis
    """
    k = pl.program_id(1)

    @pl.when(k == 0)
    def _init():
        acc_ref[...] = jnp.zeros_like(acc_ref)

    # Fused synthetic-embedder gather: one_hot(ids) @ emb_slice on the MXU.
    tm = ids_ref.shape[0]
    vp = emb_ref.shape[0]
    ids = ids_ref[...]                                              # (tm, 1)
    vocab_iota = jax.lax.broadcasted_iota(jnp.int32, (tm, vp), 1)   # (tm, Vp)
    onehot = jnp.where(vocab_iota == ids, 1.0, 0.0).astype(jnp.bfloat16)
    h = jnp.dot(onehot, emb_ref[...],
                preferred_element_type=jnp.float32)                 # (tm, tk)
    h = h * mask_ref[...].astype(jnp.float32)                       # attention mask

    # Tag projection, reduced over the embedding dim across the K grid axis.
    acc_ref[...] += jnp.dot(h.astype(jnp.bfloat16), w_ref[...],
                            preferred_element_type=jnp.float32)

    @pl.when(k == pl.num_programs(1) - 1)
    def _finalize():
        o_ref[...] = (acc_ref[...] + b_ref[...]).astype(o_ref.dtype)


def sequence_label_forward(x, params, *, tm=None, tk_cap=256):
    """Mirrors SequenceLabelModel.forward.

    x: dict with 'input_ids' (B, 1, S) int32 and 'attention_mask' (B, S) int
    params:
      'embed_table': (V, E) f32   synthetic embedder weights
      'out_w':       (E, T) f32   transpose of torch nn.Linear weight (T, E)
      'out_b':       (T,)   f32
    Returns logits of shape (B, S, T) in float32.
    """
    input_id = jnp.squeeze(x["input_ids"], axis=1)   # squeeze(1) -> (B, S)
    mask = x["attention_mask"]                       # (B, S)

    B, S = input_id.shape
    V, E = params["embed_table"].shape
    T = params["out_w"].shape[1]
    M = B * S

    # Lane/MXU-friendly zero padding (zeros are inert in both matmuls).
    Vp = _round_up(V, 128)
    Ep = _round_up(E, 128)
    Tp = _round_up(T, 128)

    emb = jnp.zeros((Vp, Ep), jnp.bfloat16)
    emb = emb.at[:V, :E].set(params["embed_table"].astype(jnp.bfloat16))
    w = jnp.zeros((Ep, Tp), jnp.bfloat16)
    w = w.at[:E, :T].set(params["out_w"].astype(jnp.bfloat16))
    b = jnp.zeros((1, Tp), jnp.float32)
    b = b.at[0, :T].set(params["out_b"].astype(jnp.float32))

    ids_flat = input_id.reshape(M, 1).astype(jnp.int32)
    mask_flat = mask.reshape(M, 1).astype(jnp.int32)

    # Row tile: bounded (pipelining + megacore/dual-TC + VMEM), multiple of 8.
    if tm is None:
        if M % 8 == 0:
            tm = min(256 if M > 1024 else 128, M)
        else:
            tm = M  # ragged tiny M: single full-row block (still legal)

    # Embedding-dim tile: largest multiple of 128 dividing Ep, capped at tk_cap.
    tk = 128
    for cand in range(128, min(Ep, max(tk_cap, 128)) + 1, 128):
        if Ep % cand == 0:
            tk = cand

    grid = (pl.cdiv(M, tm), Ep // tk)

    # Explicit scoped-VMEM budget: double-buffered blocks + resident accumulator.
    blk_bytes = (
        2 * 2 * (tm * 128 * 4)      # ids + mask blocks (lane-padded), 2 bufs each
        + 2 * (Vp * tk * 2)         # embedding-table slice (bf16)
        + 2 * (tk * Tp * 2)         # weight slice (bf16)
        + 2 * (128 * Tp * 4)        # bias (sublane-padded)
        + 2 * (tm * Tp * 4)         # output tile
        + (tm * Tp * 4)             # accumulator scratch
    )
    vmem_limit = int(min(max(2 * blk_bytes, 8 * 1024 * 1024), 48 * 1024 * 1024))

    y_pad = pl.pallas_call(
        _fused_seqlabel_kernel,
        out_shape=jax.ShapeDtypeStruct((M, Tp), jnp.float32),
        grid_spec=pltpu.PrefetchScalarGridSpec(
            num_scalar_prefetch=0,
            grid=grid,
            in_specs=[
                pl.BlockSpec((tm, 1), lambda i, k: (i, 0)),    # token ids
                pl.BlockSpec((tm, 1), lambda i, k: (i, 0)),    # attention mask
                pl.BlockSpec((Vp, tk), lambda i, k: (0, k)),   # embed table slice
                pl.BlockSpec((tk, Tp), lambda i, k: (k, 0)),   # weight slice
                pl.BlockSpec((1, Tp), lambda i, k: (0, 0)),    # bias
            ],
            out_specs=pl.BlockSpec((tm, Tp), lambda i, k: (i, 0)),
            scratch_shapes=[pltpu.VMEM((tm, Tp), jnp.float32)],
        ),
        compiler_params=pltpu.CompilerParams(
            dimension_semantics=("parallel", "arbitrary"),
            vmem_limit_bytes=vmem_limit,
        ),
    )(ids_flat, mask_flat, emb, w, b)

    return y_pad[:, :T].reshape(B, S, T)


if __name__ == "__main__":
    # Small shapes consistent with the module defaults (embed_size=512,
    # n_tags=100); S=128 so the row grid has >1 parallel step and the
    # embedding-dim grid has 2 reduction steps.
    B, S, E, T, V = 2, 128, 512, 100, 64

    key = jax.random.PRNGKey(0)
    k_ids, k_mask, k_emb, k_w, k_b = jax.random.split(key, 5)

    input_ids = jax.random.randint(k_ids, (B, 1, S), 0, V, dtype=jnp.int32)
    attention_mask = (jax.random.uniform(k_mask, (B, S)) > 0.15).astype(jnp.int32)
    x = {"input_ids": input_ids, "attention_mask": attention_mask}

    params = {
        "embed_table": jax.random.normal(k_emb, (V, E), dtype=jnp.float32) * 0.02,
        # stored as (E, T) == PyTorch Linear weight (T, E) transposed
        "out_w": jax.random.normal(k_w, (E, T), dtype=jnp.float32) * 0.02,
        "out_b": jax.random.normal(k_b, (T,), dtype=jnp.float32) * 0.02,
    }

    y = sequence_label_forward(x, params)
    y = jax.block_until_ready(y)
    assert y.shape == (B, S, T)

    # Reference with the same bf16 quantization of the MXU operands
    # (f32 accumulation), matching the kernel's numerics.
    emb_bf = params["embed_table"].astype(jnp.bfloat16).astype(jnp.float32)
    w_bf = params["out_w"].astype(jnp.bfloat16).astype(jnp.float32)
    hidden = jnp.take(emb_bf, jnp.squeeze(input_ids, 1), axis=0)
    hidden = hidden * attention_mask[..., None].astype(jnp.float32)
    y_ref = hidden @ w_bf + params["out_b"]

    err = float(jnp.max(jnp.abs(y - y_ref)))
    assert jnp.allclose(y, y_ref, atol=1e-4, rtol=1e-4), f"max abs err {err}"

    print("KERNEL_OK")
</pallas_src>

<mosaic_0001>
module attributes {stable_mosaic.version = 11 : i64} {
  func.func @_fused_seqlabel_kernel(%arg0: i32, %arg1: i32, %arg2: memref<128x1xi32, #tpu.memory_space<vmem>>, %arg3: memref<128x1xi32, #tpu.memory_space<vmem>>, %arg4: memref<128x256xbf16, #tpu.memory_space<vmem>>, %arg5: memref<256x128xbf16, #tpu.memory_space<vmem>>, %arg6: memref<1x128xf32, #tpu.memory_space<vmem>>, %arg7: memref<128x128xf32, #tpu.memory_space<vmem>>, %arg8: memref<128x128xf32, #tpu.memory_space<vmem>>) attributes {dimension_semantics = [#tpu.dimension_semantics<parallel>, #tpu.dimension_semantics<arbitrary>], iteration_bounds = array<i64: 2, 2>, scalar_prefetch = 0 : i64, scratch_operands = 1 : i64, tpu.core_type = #tpu.core_type<tc>, window_params = [{transform_indices = @transform_0, window_bounds = array<i64: 128, 1>}, {transform_indices = @transform_1, window_bounds = array<i64: 128, 1>}, {transform_indices = @transform_2, window_bounds = array<i64: 128, 256>}, {transform_indices = @transform_3, window_bounds = array<i64: 256, 128>}, {pipeline_mode = #tpu.pipeline_mode<synchronous>, transform_indices = @transform_4, window_bounds = array<i64: 1, 128>}, {transform_indices = @transform_5, window_bounds = array<i64: 128, 128>}]} {
    %c0_i32 = arith.constant 0 : i32
    %0 = arith.cmpi eq, %arg1, %c0_i32 : i32
    %1 = arith.extui %0 : i1 to i32
    %c0_i32_0 = arith.constant 0 : i32
    %2 = arith.cmpi ne, %1, %c0_i32_0 : i32
    scf.if %2 {
      %cst_16 = arith.constant 0.000000e+00 : f32
      %26 = vector.broadcast %cst_16 : f32 to vector<128x128xf32>
      %c0_17 = arith.constant 0 : index
      %c0_18 = arith.constant 0 : index
      %27 = vector.load %arg8[%c0_17, %c0_18] : memref<128x128xf32, #tpu.memory_space<vmem>>, vector<128x128xf32>
      tpu.vector_store %arg8[%c0_17, %c0_18], %26 {strides = array<i32>} : memref<128x128xf32, #tpu.memory_space<vmem>>, vector<128x128xf32>,
    } else {
    }
    %c0 = arith.constant 0 : index
    %c0_1 = arith.constant 0 : index
    %3 = vector.load %arg2[%c0, %c0_1] : memref<128x1xi32, #tpu.memory_space<vmem>>, vector<128x1xi32>
    %4 = tpu.iota {dimensions = array<i32: 1>} : vector<128x128xi32>
    %5 = vector.broadcast %3 : vector<128x1xi32> to vector<128x128xi32>
    %6 = arith.cmpi eq, %4, %5 : vector<128x128xi32>
    %cst = arith.constant 1.000000e+00 : f32
    %cst_2 = arith.constant 0.000000e+00 : f32
    %7 = vector.broadcast %cst : f32 to vector<128x128xf32>
    %8 = vector.broadcast %cst_2 : f32 to vector<128x128xf32>
    %9 = arith.select %6, %7, %8 : vector<128x128xi1>, vector<128x128xf32>
    %10 = arith.truncf %9 : vector<128x128xf32> to vector<128x128xbf16>
    %c0_3 = arith.constant 0 : index
    %c0_4 = arith.constant 0 : index
    %11 = vector.load %arg4[%c0_3, %c0_4] : memref<128x256xbf16, #tpu.memory_space<vmem>>, vector<128x256xbf16>
    %cst_5 = arith.constant dense<0.000000e+00> : vector<128x256xf32>
    %12 = tpu.matmul %10, %11, %cst_5 {dimension_numbers = #tpu.dot_dimension_numbers<[1], [0], [0], [1], [0, 0, 1, 1], [], []>} : vector<128x128xbf16>, vector<128x256xbf16>, vector<128x256xf32> -> vector<128x256xf32>
    %c0_6 = arith.constant 0 : index
    %c0_7 = arith.constant 0 : index
    %13 = vector.load %arg3[%c0_6, %c0_7] : memref<128x1xi32, #tpu.memory_space<vmem>>, vector<128x1xi32>
    %14 = arith.sitofp %13 : vector<128x1xi32> to vector<128x1xf32>
    %15 = vector.broadcast %14 : vector<128x1xf32> to vector<128x256xf32>
    %16 = arith.mulf %12, %15 : vector<128x256xf32>
    %c0_8 = arith.constant 0 : index
    %c0_9 = arith.constant 0 : index
    %17 = vector.load %arg8[%c0_8, %c0_9] : memref<128x128xf32, #tpu.memory_space<vmem>>, vector<128x128xf32>
    %18 = arith.truncf %16 : vector<128x256xf32> to vector<128x256xbf16>
    %c0_10 = arith.constant 0 : index
    %c0_11 = arith.constant 0 : index
    %19 = vector.load %arg5[%c0_10, %c0_11] : memref<256x128xbf16, #tpu.memory_space<vmem>>, vector<256x128xbf16>
    %cst_12 = arith.constant dense<0.000000e+00> : vector<128x128xf32>
    %20 = tpu.matmul %18, %19, %cst_12 {dimension_numbers = #tpu.dot_dimension_numbers<[1], [0], [0], [1], [0, 0, 1, 1], [], []>} : vector<128x256xbf16>, vector<256x128xbf16>, vector<128x128xf32> -> vector<128x128xf32>
    %21 = arith.addf %17, %20 : vector<128x128xf32>
    %c0_13 = arith.constant 0 : index
    %c0_14 = arith.constant 0 : index
    %22 = vector.load %arg8[%c0_13, %c0_14] : memref<128x128xf32, #tpu.memory_space<vmem>>, vector<128x128xf32>
    tpu.vector_store %arg8[%c0_13, %c0_14], %21 {strides = array<i32>} : memref<128x128xf32, #tpu.memory_space<vmem>>, vector<128x128xf32>,
    %c1_i32 = arith.constant 1 : i32
    %23 = arith.cmpi eq, %arg1, %c1_i32 : i32
    %24 = arith.extui %23 : i1 to i32
    %c0_i32_15 = arith.constant 0 : i32
    %25 = arith.cmpi ne, %24, %c0_i32_15 : i32
    scf.if %25 {
      %c0_16 = arith.constant 0 : index
      %c0_17 = arith.constant 0 : index
      %26 = vector.load %arg8[%c0_16, %c0_17] : memref<128x128xf32, #tpu.memory_space<vmem>>, vector<128x128xf32>
      %c0_18 = arith.constant 0 : index
      %c0_19 = arith.constant 0 : index
      %27 = vector.load %arg6[%c0_18, %c0_19] : memref<1x128xf32, #tpu.memory_space<vmem>>, vector<1x128xf32>
      %28 = vector.broadcast %27 : vector<1x128xf32> to vector<128x128xf32>
      %29 = arith.addf %26, %28 : vector<128x128xf32>
      %c0_20 = arith.constant 0 : index
      %c0_21 = arith.constant 0 : index
      %30 = vector.load %arg7[%c0_20, %c0_21] : memref<128x128xf32, #tpu.memory_space<vmem>>, vector<128x128xf32>
      tpu.vector_store %arg7[%c0_20, %c0_21], %29 {strides = array<i32>} : memref<128x128xf32, #tpu.memory_space<vmem>>, vector<128x128xf32>,
    } else {
    }
    return
  }
  func.func @transform_0(%arg0: i32, %arg1: i32) -> (i32, i32) {
    %c0_i32 = arith.constant 0 : i32
    %c0_i32_0 = arith.constant 0 : i32
    return %arg0, %c0_i32 : i32, i32
  }
  func.func @transform_1(%arg0: i32, %arg1: i32) -> (i32, i32) {
    %c0_i32 = arith.constant 0 : i32
    %c0_i32_0 = arith.constant 0 : i32
    return %arg0, %c0_i32 : i32, i32
  }
  func.func @transform_2(%arg0: i32, %arg1: i32) -> (i32, i32) {
    %c0_i32 = arith.constant 0 : i32
    %c0_i32_0 = arith.constant 0 : i32
    return %c0_i32, %arg1 : i32, i32
  }
  func.func @transform_3(%arg0: i32, %arg1: i32) -> (i32, i32) {
    %c0_i32 = arith.constant 0 : i32
    %c0_i32_0 = arith.constant 0 : i32
    return %arg1, %c0_i32 : i32, i32
  }
  func.func @transform_4(%arg0: i32, %arg1: i32) -> (i32, i32) {
    %c0_i32 = arith.constant 0 : i32
    %c0_i32_0 = arith.constant 0 : i32
    %c0_i32_1 = arith.constant 0 : i32
    return %c0_i32, %c0_i32_0 : i32, i32
  }
  func.func @transform_5(%arg0: i32, %arg1: i32) -> (i32, i32) {
    %c0_i32 = arith.constant 0 : i32
    %c0_i32_0 = arith.constant 0 : i32
    return %arg0, %c0_i32 : i32, i32
  }
}

</mosaic_0001>

<llo_original>
// kernel: tpu_custom_call.1
$region0: #{tpu_custom_call.1}
  #allocation0 [shape = 'u32[]', space=smem, size = 0x4, offset = 0x4, fixed_abs, tag = 'smem constant byte address 0x4 - core index']
  #allocation1 [shape = 'u32[72,128]{1,0:T(1,128)}', space=vmem, size = 0x9000, scoped, tag = 'internal scratch']
  #allocation2 [shape = 'f32[128,128]{1,0:T(8,128)}', space=vmem, size = 0x10000, scoped, tag = 'scratch operand']
  %s0 = inlined_call_operand.vmem [shape: s32[256,1], index: 0, kind: input, shape index: {}]
  %s1 = inlined_call_operand.vmem [shape: s32[256,1], index: 1, kind: input, shape index: {}]
  %s2 = inlined_call_operand.vmem [shape: bf16[128,512], index: 2, kind: input, shape index: {}]
  %s3 = inlined_call_operand.vmem [shape: bf16[512,128], index: 3, kind: input, shape index: {}]
  %s4 = inlined_call_operand.vmem [shape: f32[1,128], index: 4, kind: input, shape index: {}]
  %s5 = inlined_call_operand.hbm [shape: f32[256,128], index: 5, kind: output, shape index: {}]
  %s6 = sld [smem:[#allocation0]]
  $region99: #{tpu_custom_call.1} parent=0
    _
  %s8 = ssub.s32 1, %s6
  %s9 = scalar_select 0, %s8, %s6
  $region1: #{tpu_custom_call.1} parent=0
    #allocation3 [shape = 'u8[131072]{0}', space=vmem, size = 0x20000, scoped, tag = 'input window, operand 2']
    #allocation4 [shape = 'u8[131072]{0}', space=vmem, size = 0x20000, scoped, tag = 'output window, operand 0']
    #allocation5 [shape = 's32[2]{0}', space=sflag, size = 0x8, scoped, tag = 'scoped memory for tpu_custom_call.1']
    %10 = vsyncpa [#allocation5], 0
    %s11 = scalar_lea.sflag [#allocation5], 1
    %12 = vsyncpa %s11, 0
    loop: start=0, step=1, limit=6
    $region2: #{tpu_custom_call.1} parent=1 // loop_pre_header
      _
    $region3: #{tpu_custom_call.1} parent=1 // loop_header
      %s14 = sphi 0, %s18
      %p15 = scmp.ge.s32.totalorder %s14, 6
      %s21 = sphi 0, %s33
      %s22 = sphi 0, %s29
      %s23 = sphi 0, %s21
      %s24 = sphi 0, %s22
      %s25 = sphi 0, %s23
      %s26 = sphi 0, %s24
      %s36 = sphi 0, %s38
      %s39 = sphi 0, %s36
      %s40 = sphi 0, %s39
      %s56 = sphi 0, %s40
      %s62 = sphi 0, %s64
      %s65 = sphi 0, %s62
      %s66 = sphi 0, %s65
      %s82 = sphi 0, %s66
      %s88 = sphi 0, %s90
      %s91 = sphi 0, %s88
      %s92 = sphi 0, %s91
      %s108 = sphi 0, %s92
      %s114 = sphi 0, %s116
      %s117 = sphi 0, %s114
      %s118 = sphi 0, %s117
      %s134 = sphi 0, %s118
      %s138 = sphi 0, %s138
      %s140 = sphi 0, %s138
      %s141 = sphi 0, %s140
      %s155 = sphi 0, %s141
      %s161 = sphi 0, %s163
      %s164 = sphi 0, %s161
      %s165 = sphi 0, %s164
      %s181 = sphi 0, %s165
    $region4: #{tpu_custom_call.1} parent=1 // loop_header_branch
      %17 = sbr.rel (%p15) target = $region8
    $region5: #{tpu_custom_call.1} parent=1 // loop_body
      %s19 = ssub.s32 %s14, 1
      %s20 = ssub.s32 %s14, 2
      %s27 = sadd.s32 1, %s22
      %p28 = scmp.ge.s32.totalorder %s27, 2
      %s29 = scalar_select %p28, 0, %s27
      %s30 = sadd.s32 1, %s21
      %s31 = scalar_select %p28, %s30, %s21
      %p32 = scmp.ge.s32.totalorder %s31, 2
      %s33 = scalar_select %p32, 0, %s31
      %s34 = ssub.s32 %s21, %s33
      %p35 = scmp.eq.s32.totalorder %s34, 0
      %s37 = sadd.s32 %s36, 1
      %s38 = scalar_select %p35, %s36, %s37
      %p41 = pneg %p35
      %p42 = scmp.eq.s32.totalorder %s14, 3
      %p43 = por %p41, %p42
      %p44 = scmp.ne.s32.totalorder %s36, %s39
      %p45 = scmp.eq.s32.totalorder %s14, 0
      %p46 = por %p44, %p45
      %p47 = scmp.ne.s32.totalorder %s36, %s39
      %p48 = scmp.eq.s32.totalorder %s19, 3
      %p49 = por %p47, %p48
      %p50 = scmp.ne.s32.totalorder %s39, %s40
      %p51 = scmp.eq.s32.totalorder %s19, 0
      %p52 = por %p50, %p51
      %p53 = scmp.ne.s32.totalorder %s39, %s40
      %p54 = scmp.eq.s32.totalorder %s20, 3
      %p55 = por %p53, %p54
      %p57 = scmp.ne.s32.totalorder %s40, %s56
      %p58 = scmp.eq.s32.totalorder %s20, 0
      %p59 = por %p57, %p58
      %s60 = ssub.s32 %s21, %s33
      %p61 = scmp.eq.s32.totalorder %s60, 0
      %s63 = sadd.s32 %s62, 1
      %s64 = scalar_select %p61, %s62, %s63
      %p67 = pneg %p61
      %p68 = scmp.eq.s32.totalorder %s14, 3
      %p69 = por %p67, %p68
      %p70 = scmp.ne.s32.totalorder %s62, %s65
      %p71 = scmp.eq.s32.totalorder %s14, 0
      %p72 = por %p70, %p71
      %p73 = scmp.ne.s32.totalorder %s62, %s65
      %p74 = scmp.eq.s32.totalorder %s19, 3
      %p75 = por %p73, %p74
      %p76 = scmp.ne.s32.totalorder %s65, %s66
      %p77 = scmp.eq.s32.totalorder %s19, 0
      %p78 = por %p76, %p77
      %p79 = scmp.ne.s32.totalorder %s65, %s66
      %p80 = scmp.eq.s32.totalorder %s20, 3
      %p81 = por %p79, %p80
      %p83 = scmp.ne.s32.totalorder %s66, %s82
      %p84 = scmp.eq.s32.totalorder %s20, 0
      %p85 = por %p83, %p84
      %s86 = ssub.s32 %s22, %s29
      %p87 = scmp.eq.s32.totalorder %s86, 0
      %s89 = sadd.s32 %s88, 1
      %s90 = scalar_select %p87, %s88, %s89
      %p93 = pneg %p87
      %p94 = scmp.eq.s32.totalorder %s14, 3
      %p95 = por %p93, %p94
      %p96 = scmp.ne.s32.totalorder %s88, %s91
      %p97 = scmp.eq.s32.totalorder %s14, 0
      %p98 = por %p96, %p97
      %p99 = scmp.ne.s32.totalorder %s88, %s91
      %p100 = scmp.eq.s32.totalorder %s19, 3
      %p101 = por %p99, %p100
      %p102 = scmp.ne.s32.totalorder %s91, %s92
      %p103 = scmp.eq.s32.totalorder %s19, 0
      %p104 = por %p102, %p103
      %p105 = scmp.ne.s32.totalorder %s91, %s92
      %p106 = scmp.eq.s32.totalorder %s20, 3
      %p107 = por %p105, %p106
      %p109 = scmp.ne.s32.totalorder %s92, %s108
      %p110 = scmp.eq.s32.totalorder %s20, 0
      %p111 = por %p109, %p110
      %s112 = ssub.s32 %s22, %s29
      %p113 = scmp.eq.s32.totalorder %s112, 0
      %s115 = sadd.s32 %s114, 1
      %s116 = scalar_select %p113, %s114, %s115
      %p119 = pneg %p113
      %p120 = scmp.eq.s32.totalorder %s14, 3
      %p121 = por %p119, %p120
      %p122 = scmp.ne.s32.totalorder %s114, %s117
      %p123 = scmp.eq.s32.totalorder %s14, 0
      %p124 = por %p122, %p123
      %p125 = scmp.ne.s32.totalorder %s114, %s117
      %p126 = scmp.eq.s32.totalorder %s19, 3
      %p127 = por %p125, %p126
      %p128 = scmp.ne.s32.totalorder %s117, %s118
      %p129 = scmp.eq.s32.totalorder %s19, 0
      %p130 = por %p128, %p129
      %p131 = scmp.ne.s32.totalorder %s117, %s118
      %p132 = scmp.eq.s32.totalorder %s20, 3
      %p133 = por %p131, %p132
      %p135 = scmp.ne.s32.totalorder %s118, %s134
      %p136 = scmp.eq.s32.totalorder %s20, 0
      %p137 = por %p135, %p136
      %s139 = sadd.s32 %s138, 1
      %p142 = scmp.eq.s32.totalorder %s14, 3
      %p143 = scmp.ne.s32.totalorder %s138, %s140
      %p144 = scmp.eq.s32.totalorder %s14, 0
      %p145 = por %p143, %p144
      %p146 = scmp.ne.s32.totalorder %s138, %s140
      %p147 = scmp.eq.s32.totalorder %s19, 3
      %p148 = por %p146, %p147
      %p149 = scmp.ne.s32.totalorder %s140, %s141
      %p150 = scmp.eq.s32.totalorder %s19, 0
      %p151 = por %p149, %p150
      %p152 = scmp.ne.s32.totalorder %s140, %s141
      %p153 = scmp.eq.s32.totalorder %s20, 3
      %p154 = por %p152, %p153
      %p156 = scmp.ne.s32.totalorder %s141, %s155
      %p157 = scmp.eq.s32.totalorder %s20, 0
      %p158 = por %p156, %p157
      %s159 = ssub.s32 %s21, %s33
      %p160 = scmp.eq.s32.totalorder %s159, 0
      %s162 = sadd.s32 %s161, 1
      %s163 = scalar_select %p160, %s161, %s162
      %p166 = pneg %p160
      %p167 = scmp.eq.s32.totalorder %s14, 3
      %p168 = por %p166, %p167
      %p169 = scmp.ne.s32.totalorder %s161, %s164
      %p170 = scmp.eq.s32.totalorder %s14, 0
      %p171 = por %p169, %p170
      %p172 = scmp.ne.s32.totalorder %s161, %s164
      %p173 = scmp.eq.s32.totalorder %s19, 3
      %p174 = por %p172, %p173
      %p175 = scmp.ne.s32.totalorder %s164, %s165
      %p176 = scmp.eq.s32.totalorder %s19, 0
      %p177 = por %p175, %p176
      %p178 = scmp.ne.s32.totalorder %s164, %s165
      %p179 = scmp.eq.s32.totalorder %s20, 3
      %p180 = por %p178, %p179
      %p182 = scmp.ne.s32.totalorder %s165, %s181
      %p183 = scmp.eq.s32.totalorder %s20, 0
      %p184 = por %p182, %p183
      %p185 = scmp.le.s32.totalorder 1, %s14
      %p186 = scmp.lt.s32.totalorder %s14, 5
      %p187 = pnand %p185, %p186
      %p188 = pneg %p187
      // Predicated region
      $region9: #{tpu_custom_call.1} parent=5 // pred_check
        _
      $region10: #{tpu_custom_call.1} parent=5 // pred_check_branch
        %190 = sbr.rel (%p187) target = $region12
      $region11: #{tpu_custom_call.1} parent=5 // pred_region
        %s191 = ssub.s32 %s14, 1
        // Predicated region
        $region13: #{tpu_custom_call.1} parent=11 // pred_check
          %p192 = pneg %p151
        $region14: #{tpu_custom_call.1} parent=11 // pred_check_branch
          %194 = sbr.rel (%p192) target = $region16
        $region15: #{tpu_custom_call.1} parent=11 // pred_region
          _
        $region16: #{tpu_custom_call.1} parent=11 // pred_fallthru
          _
      $region12: #{tpu_custom_call.1} parent=5 // pred_fallthru
        _
      %p195 = scmp.lt.s32.totalorder %s14, 4
      // Predicated region
      $region17: #{tpu_custom_call.1} parent=5 // pred_check
        %p196 = pneg %p195
      $region18: #{tpu_custom_call.1} parent=5 // pred_check_branch
        %198 = sbr.rel (%p196) target = $region20
      $region19: #{tpu_custom_call.1} parent=5 // pred_region
        // Predicated region
        $region21: #{tpu_custom_call.1} parent=19 // pred_check
          %p199 = pneg %p46
        $region22: #{tpu_custom_call.1} parent=19 // pred_check_branch
          %201 = sbr.rel (%p199) target = $region24
        $region23: #{tpu_custom_call.1} parent=19 // pred_region
          %s202 = smul.u32 16, %s21
          %p203 = scmp.lt.s32.totalorder %s202, 31
          %s204 = scalar_select %p203, %s202, 31
          %s205 = smul.addr %s204, 8
          %s206 = scalar_lea.vmem %s0, %s205
          %s207 = smul.u32 16, %s21
        $region24: #{tpu_custom_call.1} parent=19 // pred_fallthru
          _
        // Predicated region
        $region25: #{tpu_custom_call.1} parent=19 // pred_check
          %p208 = pneg %p72
        $region26: #{tpu_custom_call.1} parent=19 // pred_check_branch
          %210 = sbr.rel (%p208) target = $region28
        $region27: #{tpu_custom_call.1} parent=19 // pred_region
          %s211 = smul.u32 16, %s21
          %p212 = scmp.lt.s32.totalorder %s211, 31
          %s213 = scalar_select %p212, %s211, 31
          %s214 = smul.addr %s213, 8
          %s215 = scalar_lea.vmem %s1, %s214
          %s216 = smul.u32 16, %s21
        $region28: #{tpu_custom_call.1} parent=19 // pred_fallthru
          _
        // Predicated region
        $region29: #{tpu_custom_call.1} parent=19 // pred_check
          %p217 = pneg %p98
        $region30: #{tpu_custom_call.1} parent=19 // pred_check_branch
          %219 = sbr.rel (%p217) target = $region32
        $region31: #{tpu_custom_call.1} parent=19 // pred_region
          %s220 = sand.u32 %s88, 1
          %s221 = sand.u32 %s88, 1
          %s222 = smul.addr %s221, 128
          %s223 = scalar_lea.vmem [#allocation3], %s222
          %s224 = smul.u32 2, %s22
          %s225 = smul.addr %s224, 4
          %s226 = scalar_lea.vmem %s2, %s225
          // Predicated region
          $region33: #{tpu_custom_call.1} parent=31 // pred_check
            _
          $region34: #{tpu_custom_call.1} parent=31 // pred_check_branch
            %228 = sbr.rel (0) target = $region36
          $region35: #{tpu_custom_call.1} parent=31 // pred_region
            // Predicated region
            $region37: #{tpu_custom_call.1} parent=35 // pred_check
              _
            $region38: #{tpu_custom_call.1} parent=35 // pred_check_branch
              %230 = sbr.rel (0) target = $region40
            $region39: #{tpu_custom_call.1} parent=35 // pred_region
              // Predicated region
              $region52: #{tpu_custom_call.1} parent=39 // pred_check
                _
              $region53: #{tpu_custom_call.1} parent=39 // pred_check_branch
                %276 = sbr.rel (0) target = $region55
              $region54: #{tpu_custom_call.1} parent=39 // pred_region
                loop: start=0, step=1, limit=1
                $region56: #{tpu_custom_call.1} parent=54 // loop_pre_header
                  _
                $region57: #{tpu_custom_call.1} parent=54 // loop_header
                  %s278 = sphi 0, %s282
                  %p279 = scmp.ge.s32.totalorder %s278, 1
                  %s283 = sphi %s226, %s226
                  %s284 = sphi %s223, %s223
                $region58: #{tpu_custom_call.1} parent=54 // loop_header_branch
                  %281 = sbr.rel (%p279) target = $region62
                $region59: #{tpu_custom_call.1} parent=54 // loop_body
                  %v285 = vld [vmem:[%s283] sm:$0xff]
                  %286 = vst [vmem:[%s284] sm:$0xff] %v285
                  %v287 = vld [vmem:[%s283 + $0x10] sm:$0xff]
                  %288 = vst [vmem:[%s284 + $0x8] sm:$0xff] %v287
                  %v289 = vld [vmem:[%s283 + $0x20] sm:$0xff]
                  %290 = vst [vmem:[%s284 + $0x10] sm:$0xff] %v289
                  %v291 = vld [vmem:[%s283 + $0x30] sm:$0xff]
                  %292 = vst [vmem:[%s284 + $0x18] sm:$0xff] %v291
                  %v293 = vld [vmem:[%s283 + $0x40] sm:$0xff]
                  %294 = vst [vmem:[%s284 + $0x20] sm:$0xff] %v293
                  %v295 = vld [vmem:[%s283 + $0x50] sm:$0xff]
                  %296 = vst [vmem:[%s284 + $0x28] sm:$0xff] %v295
                  %v297 = vld [vmem:[%s283 + $0x60] sm:$0xff]
                  %298 = vst [vmem:[%s284 + $0x30] sm:$0xff] %v297
                  %v299 = vld [vmem:[%s283 + $0x70] sm:$0xff]
                  %300 = vst [vmem:[%s284 + $0x38] sm:$0xff] %v299
                  %v301 = vld [vmem:[%s283 + $0x80] sm:$0xff]
                  %302 = vst [vmem:[%s284 + $0x40] sm:$0xff] %v301
                  %v303 = vld [vmem:[%s283 + $0x90] sm:$0xff]
                  %304 = vst [vmem:[%s284 + $0x48] sm:$0xff] %v303
                  %v305 = vld [vmem:[%s283 + $0xa0] sm:$0xff]
                  %306 = vst [vmem:[%s284 + $0x50] sm:$0xff] %v305
                  %v307 = vld [vmem:[%s283 + $0xb0] sm:$0xff]
                  %308 = vst [vmem:[%s284 + $0x58] sm:$0xff] %v307
                  %v309 = vld [vmem:[%s283 + $0xc0] sm:$0xff]
                  %310 = vst [vmem:[%s284 + $0x60] sm:$0xff] %v309
                  %v311 = vld [vmem:[%s283 + $0xd0] sm:$0xff]
                  %312 = vst [vmem:[%s284 + $0x68] sm:$0xff] %v311
                  %v313 = vld [vmem:[%s283 + $0xe0] sm:$0xff]
                  %314 = vst [vmem:[%s284 + $0x70] sm:$0xff] %v313
                  %v315 = vld [vmem:[%s283 + $0xf0] sm:$0xff]
                  %316 = vst [vmem:[%s284 + $0x78] sm:$0xff] %v315
                $region60: #{tpu_custom_call.1} parent=54 // loop_footer
                  %s282 = sadd.s32 1, %s278
                $region61: #{tpu_custom_call.1} parent=54 // loop_footer_branch
                  %277 = sbr.rel target = $region57
                $region62: #{tpu_custom_call.1} parent=54 // loop_exit
                  _
              $region55: #{tpu_custom_call.1} parent=39 // pred_fallthru
                _
              // Predicated region
              $region63: #{tpu_custom_call.1} parent=39 // pred_check
                _
              $region64: #{tpu_custom_call.1} parent=39 // pred_check_branch
                %318 = sbr.rel target = $region66
              $region65: #{tpu_custom_call.1} parent=39 // pred_region
                _
              $region66: #{tpu_custom_call.1} parent=39 // pred_fallthru
                _
            $region40: #{tpu_custom_call.1} parent=35 // pred_fallthru
              _
            // Predicated region
            $region41: #{tpu_custom_call.1} parent=35 // pred_check
              _
            $region42: #{tpu_custom_call.1} parent=35 // pred_check_branch
              %232 = sbr.rel target = $region44
            $region43: #{tpu_custom_call.1} parent=35 // pred_region
              %s234 = ssub.s32 256, 1
              loop: start=0, step=1, limit=1
              $region45: #{tpu_custom_call.1} parent=43 // loop_pre_header
                _
              $region46: #{tpu_custom_call.1} parent=43 // loop_header
                %s236 = sphi 0, %s240
                %p237 = scmp.ge.s32.totalorder %s236, 1
                %s241 = sphi %s226, %s226
                %s242 = sphi %s223, %s223
              $region47: #{tpu_custom_call.1} parent=43 // loop_header_branch
                %239 = sbr.rel (%p237) target = $region51
              $region48: #{tpu_custom_call.1} parent=43 // loop_body
                %v243 = vld [vmem:[%s241] sm:%s234]
                %244 = vst [vmem:[%s242] sm:%s234] %v243
                %v245 = vld [vmem:[%s241 + $0x10] sm:%s234]
                %246 = vst [vmem:[%s242 + $0x8] sm:%s234] %v245
                %v247 = vld [vmem:[%s241 + $0x20] sm:%s234]
                %248 = vst [vmem:[%s242 + $0x10] sm:%s234] %v247
                %v249 = vld [vmem:[%s241 + $0x30] sm:%s234]
                %250 = vst [vmem:[%s242 + $0x18] sm:%s234] %v249
                %v251 = vld [vmem:[%s241 + $0x40] sm:%s234]
                %252 = vst [vmem:[%s242 + $0x20] sm:%s234] %v251
                %v253 = vld [vmem:[%s241 + $0x50] sm:%s234]
                %254 = vst [vmem:[%s242 + $0x28] sm:%s234] %v253
                %v255 = vld [vmem:[%s241 + $0x60] sm:%s234]
                %256 = vst [vmem:[%s242 + $0x30] sm:%s234] %v255
                %v257 = vld [vmem:[%s241 + $0x70] sm:%s234]
                %258 = vst [vmem:[%s242 + $0x38] sm:%s234] %v257
                %v259 = vld [vmem:[%s241 + $0x80] sm:%s234]
                %260 = vst [vmem:[%s242 + $0x40] sm:%s234] %v259
                %v261 = vld [vmem:[%s241 + $0x90] sm:%s234]
                %262 = vst [vmem:[%s242 + $0x48] sm:%s234] %v261
                %v263 = vld [vmem:[%s241 + $0xa0] sm:%s234]
                %264 = vst [vmem:[%s242 + $0x50] sm:%s234] %v263
                %v265 = vld [vmem:[%s241 + $0xb0] sm:%s234]
                %266 = vst [vmem:[%s242 + $0x58] sm:%s234] %v265
                %v267 = vld [vmem:[%s241 + $0xc0] sm:%s234]
                %268 = vst [vmem:[%s242 + $0x60] sm:%s234] %v267
                %v269 = vld [vmem:[%s241 + $0xd0] sm:%s234]
                %270 = vst [vmem:[%s242 + $0x68] sm:%s234] %v269
                %v271 = vld [vmem:[%s241 + $0xe0] sm:%s234]
                %272 = vst [vmem:[%s242 + $0x70] sm:%s234] %v271
                %v273 = vld [vmem:[%s241 + $0xf0] sm:%s234]
                %274 = vst [vmem:[%s242 + $0x78] sm:%s234] %v273
              $region49: #{tpu_custom_call.1} parent=43 // loop_footer
                %s240 = sadd.s32 1, %s236
              $region50: #{tpu_custom_call.1} parent=43 // loop_footer_branch
                %235 = sbr.rel target = $region46
              $region51: #{tpu_custom_call.1} parent=43 // loop_exit
                _
            $region44: #{tpu_custom_call.1} parent=35 // pred_fallthru
              _
          $region36: #{tpu_custom_call.1} parent=31 // pred_fallthru
            _
          %319 = vnop
        $region32: #{tpu_custom_call.1} parent=19 // pred_fallthru
          _
        // Predicated region
        $region67: #{tpu_custom_call.1} parent=19 // pred_check
          %p320 = pneg %p124
        $region68: #{tpu_custom_call.1} parent=19 // pred_check_branch
          %322 = sbr.rel (%p320) target = $region70
        $region69: #{tpu_custom_call.1} parent=19 // pred_region
          %s323 = smul.u32 32, %s22
          %p324 = scmp.lt.s32.totalorder %s323, 63
          %s325 = scalar_select %p324, %s323, 63
          %s326 = smul.addr %s325, 4
          %s327 = scalar_lea.vmem %s3, %s326
          %s328 = smul.u32 32, %s22
        $region70: #{tpu_custom_call.1} parent=19 // pred_fallthru
          _
      $region20: #{tpu_custom_call.1} parent=5 // pred_fallthru
        _
      %p329 = scmp.le.s32.totalorder 1, %s14
      %p330 = scmp.lt.s32.totalorder %s14, 5
      %p331 = pnand %p329, %p330
      %p332 = pneg %p331
      // Predicated region
      $region71: #{tpu_custom_call.1} parent=5 // pred_check
        _
      $region72: #{tpu_custom_call.1} parent=5 // pred_check_branch
        %334 = sbr.rel (%p331) target = $region74
      $region73: #{tpu_custom_call.1} parent=5 // pred_region
        %s335 = ssub.s32 %s14, 1
        %s336 = sand.u32 %s91, 1
        %s337 = sand.u32 %s91, 1
        %s338 = smul.addr %s337, 128
        %s339 = scalar_lea.vmem [#allocation3], %s338
        // Predicated region
        $region75: #{tpu_custom_call.1} parent=73 // pred_check
          %p340 = pneg %p104
        $region76: #{tpu_custom_call.1} parent=73 // pred_check_branch
          %342 = sbr.rel (%p340) target = $region78
        $region77: #{tpu_custom_call.1} parent=73 // pred_region
          _
        $region78: #{tpu_custom_call.1} parent=73 // pred_fallthru
          _
        %s343 = smul.u32 16, %s23
        %p344 = scmp.lt.s32.totalorder %s343, 31
        %s345 = scalar_select %p344, %s343, 31
        %s346 = smul.addr %s345, 8
        %s347 = scalar_lea.vmem %s0, %s346
        %p348 = pneg %p52
        %p349 = pneg %p49
        %s350 = smul.u32 16, %s23
        %p351 = scmp.lt.s32.totalorder %s350, 31
        %s352 = scalar_select %p351, %s350, 31
        %s353 = smul.addr %s352, 8
        %s354 = scalar_lea.vmem %s1, %s353
        %p355 = pneg %p78
        %p356 = pneg %p75
        %s357 = sand.u32 %s91, 1
        %s358 = sand.u32 %s91, 1
        %s359 = smul.addr %s358, 128
        %s360 = scalar_lea.vmem [#allocation3], %s359
        %p361 = pneg %p104
        %p362 = pneg %p101
        %s363 = smul.u32 32, %s24
        %p364 = scmp.lt.s32.totalorder %s363, 63
        %s365 = scalar_select %p364, %s363, 63
        %s366 = smul.addr %s365, 4
        %s367 = scalar_lea.vmem %s3, %s366
        %p368 = pneg %p130
        %p369 = pneg %p127
        %p370 = pneg %p151
        %p371 = pneg %p148
        %p372 = pneg %p177
        %p373 = pneg %p174
        %s374 = sand.u32 %s164, 1
        %s375 = scalar_lea.sflag [#allocation5], %s374
        %s376 = sand.u32 %s164, 1
        %s377 = smul.addr %s376, 128
        %s378 = scalar_lea.vmem [#allocation4], %s377
        %s379 = smul.u32 16, %s23
        %p380 = scmp.lt.s32.totalorder %s379, 31
        %s381 = scalar_select %p380, %s379, 31
        %s382 = smul.addr %s381, 8
        %s383 = scalar_lea.vmem %s0, %s382
        %s384 = smul.u32 16, %s23
        %s385 = smul.u32 16, %s23
        %p386 = scmp.lt.s32.totalorder %s385, 31
        %s387 = scalar_select %p386, %s385, 31
        %s388 = smul.addr %s387, 8
        %s389 = scalar_lea.vmem %s1, %s388
        %s390 = smul.u32 16, %s23
        %s391 = smul.u32 2, %s24
        %s392 = smul.u32 32, %s24
        %p393 = scmp.lt.s32.totalorder %s392, 63
        %s394 = scalar_select %p393, %s392, 63
        %s395 = smul.addr %s394, 4
        %s396 = scalar_lea.vmem %s3, %s395
        %s397 = smul.u32 32, %s24
        %s398 = smul.u32 16, %s23
        %p399 = scmp.eq.s32.totalorder %s24, 0
        // Predicated region
        $region79: #{tpu_custom_call.1} parent=73 // pred_check
          %p400 = pneg %p399
        $region80: #{tpu_custom_call.1} parent=73 // pred_check_branch
          %402 = sbr.rel (%p400) target = $region82
        $region81: #{tpu_custom_call.1} parent=73 // pred_region
          %403 = vst [vmem:[#allocation2] sm:$0xff] 0.0
          %404 = vst [vmem:[#allocation2 + $0x8] sm:$0xff] 0.0
          %405 = vst [vmem:[#allocation2 + $0x10] sm:$0xff] 0.0
          %406 = vst [vmem:[#allocation2 + $0x18] sm:$0xff] 0.0
          %407 = vst [vmem:[#allocation2 + $0x20] sm:$0xff] 0.0
          %408 = vst [vmem:[#allocation2 + $0x28] sm:$0xff] 0.0
          %409 = vst [vmem:[#allocation2 + $0x30] sm:$0xff] 0.0
          %410 = vst [vmem:[#allocation2 + $0x38] sm:$0xff] 0.0
          %411 = vst [vmem:[#allocation2 + $0x40] sm:$0xff] 0.0
          %412 = vst [vmem:[#allocation2 + $0x48] sm:$0xff] 0.0
          %413 = vst [vmem:[#allocation2 + $0x50] sm:$0xff] 0.0
          %414 = vst [vmem:[#allocation2 + $0x58] sm:$0xff] 0.0
          %415 = vst [vmem:[#allocation2 + $0x60] sm:$0xff] 0.0
          %416 = vst [vmem:[#allocation2 + $0x68] sm:$0xff] 0.0
          %417 = vst [vmem:[#allocation2 + $0x70] sm:$0xff] 0.0
          %418 = vst [vmem:[#allocation2 + $0x78] sm:$0xff] 0.0
        $region82: #{tpu_custom_call.1} parent=73 // pred_fallthru
          _
        %v419 = vld [vmem:[%s383] sm:$0xff]
        %v420 = vld [vmem:[%s383 + $0x8] sm:$0xff]
        %v421 = vld [vmem:[%s383 + $0x10] sm:$0xff]
        %v422 = vld [vmem:[%s383 + $0x18] sm:$0xff]
        %v423 = vld [vmem:[%s383 + $0x20] sm:$0xff]
        %v424 = vld [vmem:[%s383 + $0x28] sm:$0xff]
        %v425 = vld [vmem:[%s383 + $0x30] sm:$0xff]
        %v426 = vld [vmem:[%s383 + $0x38] sm:$0xff]
        %v427 = vld [vmem:[%s383 + $0x40] sm:$0xff]
        %v428 = vld [vmem:[%s383 + $0x48] sm:$0xff]
        %v429 = vld [vmem:[%s383 + $0x50] sm:$0xff]
        %v430 = vld [vmem:[%s383 + $0x58] sm:$0xff]
        %v431 = vld [vmem:[%s383 + $0x60] sm:$0xff]
        %v432 = vld [vmem:[%s383 + $0x68] sm:$0xff]
        %v433 = vld [vmem:[%s383 + $0x70] sm:$0xff]
        %v434 = vld [vmem:[%s383 + $0x78] sm:$0xff]
        %v435 = vlaneseq
        %v436 = vand.u32 %v435, 127
        %437 = vset.pattern.permute.xlu0 0
        %438 = vperm.xlu0 %437, %v419
        %v439 = vpop.permute.xlu0 %438
        %440 = vset.pattern.permute.xlu0 0
        %441 = vperm.xlu0 %440, %v420
        %v442 = vpop.permute.xlu0 %441
        %443 = vset.pattern.permute.xlu0 0
        %444 = vperm.xlu0 %443, %v421
        %v445 = vpop.permute.xlu0 %444
        %446 = vset.pattern.permute.xlu0 0
        %447 = vperm.xlu0 %446, %v422
        %v448 = vpop.permute.xlu0 %447
        %449 = vset.pattern.permute.xlu0 0
        %450 = vperm.xlu0 %449, %v423
        %v451 = vpop.permute.xlu0 %450
        %452 = vset.pattern.permute.xlu0 0
        %453 = vperm.xlu0 %452, %v424
        %v454 = vpop.permute.xlu0 %453
        %455 = vset.pattern.permute.xlu0 0
        %456 = vperm.xlu0 %455, %v425
        %v457 = vpop.permute.xlu0 %456
        %458 = vset.pattern.permute.xlu0 0
        %459 = vperm.xlu0 %458, %v426
        %v460 = vpop.permute.xlu0 %459
        %461 = vset.pattern.permute.xlu0 0
        %462 = vperm.xlu0 %461, %v427
        %v463 = vpop.permute.xlu0 %462
        %464 = vset.pattern.permute.xlu0 0
        %465 = vperm.xlu0 %464, %v428
        %v466 = vpop.permute.xlu0 %465
        %467 = vset.pattern.permute.xlu0 0
        %468 = vperm.xlu0 %467, %v429
        %v469 = vpop.permute.xlu0 %468
        %470 = vset.pattern.permute.xlu0 0
        %471 = vperm.xlu0 %470, %v430
        %v472 = vpop.permute.xlu0 %471
        %473 = vset.pattern.permute.xlu0 0
        %474 = vperm.xlu0 %473, %v431
        %v475 = vpop.permute.xlu0 %474
        %476 = vset.pattern.permute.xlu0 0
        %477 = vperm.xlu0 %476, %v432
        %v478 = vpop.permute.xlu0 %477
        %479 = vset.pattern.permute.xlu0 0
        %480 = vperm.xlu0 %479, %v433
        %v481 = vpop.permute.xlu0 %480
        %482 = vset.pattern.permute.xlu0 0
        %483 = vperm.xlu0 %482, %v434
        %v484 = vpop.permute.xlu0 %483
        %vm485 = vcmp.eq.s32.totalorder %v436, %v439
        %vm486 = vcmp.eq.s32.totalorder %v436, %v442
        %vm487 = vcmp.eq.s32.totalorder %v436, %v445
        %vm488 = vcmp.eq.s32.totalorder %v436, %v448
        %vm489 = vcmp.eq.s32.totalorder %v436, %v451
        %vm490 = vcmp.eq.s32.totalorder %v436, %v454
        %vm491 = vcmp.eq.s32.totalorder %v436, %v457
        %vm492 = vcmp.eq.s32.totalorder %v436, %v460
        %vm493 = vcmp.eq.s32.totalorder %v436, %v463
        %vm494 = vcmp.eq.s32.totalorder %v436, %v466
        %vm495 = vcmp.eq.s32.totalorder %v436, %v469
        %vm496 = vcmp.eq.s32.totalorder %v436, %v472
        %vm497 = vcmp.eq.s32.totalorder %v436, %v475
        %vm498 = vcmp.eq.s32.totalorder %v436, %v478
        %vm499 = vcmp.eq.s32.totalorder %v436, %v481
        %vm500 = vcmp.eq.s32.totalorder %v436, %v484
        %v501 = vsel %vm485, 1.0, 0.0
        %v502 = vsel %vm486, 1.0, 0.0
        %v503 = vsel %vm487, 1.0, 0.0
        %v504 = vsel %vm488, 1.0, 0.0
        %v505 = vsel %vm489, 1.0, 0.0
        %v506 = vsel %vm490, 1.0, 0.0
        %v507 = vsel %vm491, 1.0, 0.0
        %v508 = vsel %vm492, 1.0, 0.0
        %v509 = vsel %vm493, 1.0, 0.0
        %v510 = vsel %vm494, 1.0, 0.0
        %v511 = vsel %vm495, 1.0, 0.0
        %v512 = vsel %vm496, 1.0, 0.0
        %v513 = vsel %vm497, 1.0, 0.0
        %v514 = vsel %vm498, 1.0, 0.0
        %v515 = vsel %vm499, 1.0, 0.0
        %v516 = vsel %vm500, 1.0, 0.0
        %v517 = vpack.c.bf16 %v502, %v501
        %v518 = vpack.c.bf16 %v504, %v503
        %v519 = vpack.c.bf16 %v506, %v505
        %v520 = vpack.c.bf16 %v508, %v507
        %v521 = vpack.c.bf16 %v510, %v509
        %v522 = vpack.c.bf16 %v512, %v511
        %v523 = vpack.c.bf16 %v514, %v513
        %v524 = vpack.c.bf16 %v516, %v515
        %v525 = vld [vmem:[%s339] sm:$0xff]
        %v526 = vld [vmem:[%s339 + $0x8] sm:$0xff]
        %v527 = vld [vmem:[%s339 + $0x10] sm:$0xff]
        %v528 = vld [vmem:[%s339 + $0x18] sm:$0xff]
        %v529 = vld [vmem:[%s339 + $0x20] sm:$0xff]
        %v530 = vld [vmem:[%s339 + $0x28] sm:$0xff]
        %v531 = vld [vmem:[%s339 + $0x30] sm:$0xff]
        %v532 = vld [vmem:[%s339 + $0x38] sm:$0xff]
        %v533 = vld [vmem:[%s339 + $0x40] sm:$0xff]
        %v534 = vld [vmem:[%s339 + $0x48] sm:$0xff]
        %v535 = vld [vmem:[%s339 + $0x50] sm:$0xff]
        %v536 = vld [vmem:[%s339 + $0x58] sm:$0xff]
        %v537 = vld [vmem:[%s339 + $0x60] sm:$0xff]
        %v538 = vld [vmem:[%s339 + $0x68] sm:$0xff]
        %v539 = vld [vmem:[%s339 + $0x70] sm:$0xff]
        %v540 = vld [vmem:[%s339 + $0x78] sm:$0xff]
        %v557 = vunpack.c.l.b16 %v525
        %v558 = vunpack.c.h.b16 %v525
        %v559 = vunpack.c.l.b16 %v526
        %v560 = vunpack.c.h.b16 %v526
        %v561 = vunpack.c.l.b16 %v527
        %v562 = vunpack.c.h.b16 %v527
        %v563 = vunpack.c.l.b16 %v528
        %v564 = vunpack.c.h.b16 %v528
        %v565 = vunpack.c.l.b16 %v529
        %v566 = vunpack.c.h.b16 %v529
        %v567 = vunpack.c.l.b16 %v530
        %v568 = vunpack.c.h.b16 %v530
        %v569 = vunpack.c.l.b16 %v531
        %v570 = vunpack.c.h.b16 %v531
        %v571 = vunpack.c.l.b16 %v532
        %v572 = vunpack.c.h.b16 %v532
        %v573 = vunpack.c.l.b16 %v533
        %v574 = vunpack.c.h.b16 %v533
        %v575 = vunpack.c.l.b16 %v534
        %v576 = vunpack.c.h.b16 %v534
        %v577 = vunpack.c.l.b16 %v535
        %v578 = vunpack.c.h.b16 %v535
        %v579 = vunpack.c.l.b16 %v536
        %v580 = vunpack.c.h.b16 %v536
        %v581 = vunpack.c.l.b16 %v537
        %v582 = vunpack.c.h.b16 %v537
        %v583 = vunpack.c.l.b16 %v538
        %v584 = vunpack.c.h.b16 %v538
        %v585 = vunpack.c.l.b16 %v539
        %v586 = vunpack.c.h.b16 %v539
        %v587 = vunpack.c.l.b16 %v540
        %v588 = vunpack.c.h.b16 %v540
        %v589 = vpack.c.b16 %v559, %v557
        %v590 = vpack.c.b16 %v560, %v558
        %v591 = vpack.c.b16 %v563, %v561
        %v592 = vpack.c.b16 %v564, %v562
        %v593 = vpack.c.b16 %v567, %v565
        %v594 = vpack.c.b16 %v568, %v566
        %v595 = vpack.c.b16 %v571, %v569
        %v596 = vpack.c.b16 %v572, %v570
        %v597 = vpack.c.b16 %v575, %v573
        %v598 = vpack.c.b16 %v576, %v574
        %v599 = vpack.c.b16 %v579, %v577
        %v600 = vpack.c.b16 %v580, %v578
        %v601 = vpack.c.b16 %v583, %v581
        %v602 = vpack.c.b16 %v584, %v582
        %v603 = vpack.c.b16 %v587, %v585
        %v604 = vpack.c.b16 %v588, %v586
        %621 = vmatpush.bf16.msra.mxu0 %v603
        %622 = vmatpush.bf16.msra.mxu0 %v601
        %623 = vmatpush.bf16.msra.mxu0 %v599
        %624 = vmatpush.bf16.msra.mxu0 %v597
        %625 = vmatpush.bf16.msra.mxu0 %v595
        %626 = vmatpush.bf16.msra.mxu0 %v593
        %627 = vmatpush.bf16.msra.mxu0 %v591
        %628 = vmatpush.bf16.msra.mxu0 %v589
        %629 = vmatmul.bf16.gmra.mxu0 %v517
        %v630 = vpop.f32.mrf.mxu0
        %v631 = vadd.f32 0.0, %v630
        %v632 = vpop.f32.mrf.mxu0
        %v633 = vadd.f32 0.0, %v632
        %634 = vmatmul.bf16.gmra.mxu0 %v518
        %v635 = vpop.f32.mrf.mxu0
        %v636 = vadd.f32 0.0, %v635
        %v637 = vpop.f32.mrf.mxu0
        %v638 = vadd.f32 0.0, %v637
        %639 = vmatmul.bf16.gmra.mxu0 %v519
        %v640 = vpop.f32.mrf.mxu0
        %v641 = vadd.f32 0.0, %v640
        %v642 = vpop.f32.mrf.mxu0
        %v643 = vadd.f32 0.0, %v642
        %644 = vmatmul.bf16.gmra.mxu0 %v520
        %v645 = vpop.f32.mrf.mxu0
        %v646 = vadd.f32 0.0, %v645
        %v647 = vpop.f32.mrf.mxu0
        %v648 = vadd.f32 0.0, %v647
        %649 = vmatmul.bf16.gmra.mxu0 %v521
        %v650 = vpop.f32.mrf.mxu0
        %v651 = vadd.f32 0.0, %v650
        %v652 = vpop.f32.mrf.mxu0
        %v653 = vadd.f32 0.0, %v652
        %654 = vmatmul.bf16.gmra.mxu0 %v522
        %v655 = vpop.f32.mrf.mxu0
        %v656 = vadd.f32 0.0, %v655
        %v657 = vpop.f32.mrf.mxu0
        %v658 = vadd.f32 0.0, %v657
        %659 = vmatmul.bf16.gmra.mxu0 %v523
        %v660 = vpop.f32.mrf.mxu0
        %v661 = vadd.f32 0.0, %v660
        %v662 = vpop.f32.mrf.mxu0
        %v663 = vadd.f32 0.0, %v662
        %664 = vmatmul.bf16.gmra.mxu0 %v524
        %v665 = vpop.f32.mrf.mxu0
        %v666 = vadd.f32 0.0, %v665
        %v667 = vpop.f32.mrf.mxu0
        %v668 = vadd.f32 0.0, %v667
        %669 = vdwg.mxu0
        %670 = vmatpush.bf16.msra.mxu0 %v604
        %671 = vmatpush.bf16.msra.mxu0 %v602
        %672 = vmatpush.bf16.msra.mxu0 %v600
        %673 = vmatpush.bf16.msra.mxu0 %v598
        %674 = vmatpush.bf16.msra.mxu0 %v596
        %675 = vmatpush.bf16.msra.mxu0 %v594
        %676 = vmatpush.bf16.msra.mxu0 %v592
        %677 = vmatpush.bf16.msra.mxu0 %v590
        %678 = vmatmul.bf16.gmra.mxu0 %v517
        %v679 = vpop.f32.mrf.mxu0
        %v680 = vadd.f32 0.0, %v679
        %v681 = vpop.f32.mrf.mxu0
        %v682 = vadd.f32 0.0, %v681
        %683 = vmatmul.bf16.gmra.mxu0 %v518
        %v684 = vpop.f32.mrf.mxu0
        %v685 = vadd.f32 0.0, %v684
        %v686 = vpop.f32.mrf.mxu0
        %v687 = vadd.f32 0.0, %v686
        %688 = vmatmul.bf16.gmra.mxu0 %v519
        %v689 = vpop.f32.mrf.mxu0
        %v690 = vadd.f32 0.0, %v689
        %v691 = vpop.f32.mrf.mxu0
        %v692 = vadd.f32 0.0, %v691
        %693 = vmatmul.bf16.gmra.mxu0 %v520
        %v694 = vpop.f32.mrf.mxu0
        %v695 = vadd.f32 0.0, %v694
        %v696 = vpop.f32.mrf.mxu0
        %v697 = vadd.f32 0.0, %v696
        %698 = vmatmul.bf16.gmra.mxu0 %v521
        %v699 = vpop.f32.mrf.mxu0
        %v700 = vadd.f32 0.0, %v699
        %v701 = vpop.f32.mrf.mxu0
        %v702 = vadd.f32 0.0, %v701
        %703 = vmatmul.bf16.gmra.mxu0 %v522
        %v704 = vpop.f32.mrf.mxu0
        %v705 = vadd.f32 0.0, %v704
        %v706 = vpop.f32.mrf.mxu0
        %v707 = vadd.f32 0.0, %v706
        %708 = vmatmul.bf16.gmra.mxu0 %v523
        %v709 = vpop.f32.mrf.mxu0
        %v710 = vadd.f32 0.0, %v709
        %v711 = vpop.f32.mrf.mxu0
        %v712 = vadd.f32 0.0, %v711
        %713 = vmatmul.bf16.gmra.mxu0 %v524
        %v714 = vpop.f32.mrf.mxu0
        %v715 = vadd.f32 0.0, %v714
        %v716 = vpop.f32.mrf.mxu0
        %v717 = vadd.f32 0.0, %v716
        %718 = vdwg.mxu0
        %v719 = vld [vmem:[%s389] sm:$0xff]
        %v720 = vld [vmem:[%s389 + $0x8] sm:$0xff]
        %v721 = vld [vmem:[%s389 + $0x10] sm:$0xff]
        %v722 = vld [vmem:[%s389 + $0x18] sm:$0xff]
        %v723 = vld [vmem:[%s389 + $0x20] sm:$0xff]
        %v724 = vld [vmem:[%s389 + $0x28] sm:$0xff]
        %v725 = vld [vmem:[%s389 + $0x30] sm:$0xff]
        %v726 = vld [vmem:[%s389 + $0x38] sm:$0xff]
        %v727 = vld [vmem:[%s389 + $0x40] sm:$0xff]
        %v728 = vld [vmem:[%s389 + $0x48] sm:$0xff]
        %v729 = vld [vmem:[%s389 + $0x50] sm:$0xff]
        %v730 = vld [vmem:[%s389 + $0x58] sm:$0xff]
        %v731 = vld [vmem:[%s389 + $0x60] sm:$0xff]
        %v732 = vld [vmem:[%s389 + $0x68] sm:$0xff]
        %v733 = vld [vmem:[%s389 + $0x70] sm:$0xff]
        %v734 = vld [vmem:[%s389 + $0x78] sm:$0xff]
        %v735 = vcvt.s32.f32 %v719
        %v736 = vcvt.s32.f32 %v720
        %v737 = vcvt.s32.f32 %v721
        %v738 = vcvt.s32.f32 %v722
        %v739 = vcvt.s32.f32 %v723
        %v740 = vcvt.s32.f32 %v724
        %v741 = vcvt.s32.f32 %v725
        %v742 = vcvt.s32.f32 %v726
        %v743 = vcvt.s32.f32 %v727
        %v744 = vcvt.s32.f32 %v728
        %v745 = vcvt.s32.f32 %v729
        %v746 = vcvt.s32.f32 %v730
        %v747 = vcvt.s32.f32 %v731
        %v748 = vcvt.s32.f32 %v732
        %v749 = vcvt.s32.f32 %v733
        %v750 = vcvt.s32.f32 %v734
        %752 = vset.pattern.permute.xlu0 0
        %753 = vperm.xlu0 %752, %v735
        %v754 = vpop.permute.xlu0 %753
        %757 = vset.pattern.permute.xlu0 0
        %758 = vperm.xlu0 %757, %v736
        %v759 = vpop.permute.xlu0 %758
        %762 = vset.pattern.permute.xlu0 0
        %763 = vperm.xlu0 %762, %v737
        %v764 = vpop.permute.xlu0 %763
        %767 = vset.pattern.permute.xlu0 0
        %768 = vperm.xlu0 %767, %v738
        %v769 = vpop.permute.xlu0 %768
        %772 = vset.pattern.permute.xlu0 0
        %773 = vperm.xlu0 %772, %v739
        %v774 = vpop.permute.xlu0 %773
        %777 = vset.pattern.permute.xlu0 0
        %778 = vperm.xlu0 %777, %v740
        %v779 = vpop.permute.xlu0 %778
        %782 = vset.pattern.permute.xlu0 0
        %783 = vperm.xlu0 %782, %v741
        %v784 = vpop.permute.xlu0 %783
        %787 = vset.pattern.permute.xlu0 0
        %788 = vperm.xlu0 %787, %v742
        %v789 = vpop.permute.xlu0 %788
        %792 = vset.pattern.permute.xlu0 0
        %793 = vperm.xlu0 %792, %v743
        %v794 = vpop.permute.xlu0 %793
        %797 = vset.pattern.permute.xlu0 0
        %798 = vperm.xlu0 %797, %v744
        %v799 = vpop.permute.xlu0 %798
        %802 = vset.pattern.permute.xlu0 0
        %803 = vperm.xlu0 %802, %v745
        %v804 = vpop.permute.xlu0 %803
        %807 = vset.pattern.permute.xlu0 0
        %808 = vperm.xlu0 %807, %v746
        %v809 = vpop.permute.xlu0 %808
        %812 = vset.pattern.permute.xlu0 0
        %813 = vperm.xlu0 %812, %v747
        %v814 = vpop.permute.xlu0 %813
        %817 = vset.pattern.permute.xlu0 0
        %818 = vperm.xlu0 %817, %v748
        %v819 = vpop.permute.xlu0 %818
        %822 = vset.pattern.permute.xlu0 0
        %823 = vperm.xlu0 %822, %v749
        %v824 = vpop.permute.xlu0 %823
        %827 = vset.pattern.permute.xlu0 0
        %828 = vperm.xlu0 %827, %v750
        %v829 = vpop.permute.xlu0 %828
        %v831 = vmul.f32 %v631, %v754
        %v832 = vmul.f32 %v680, %v754
        %v833 = vmul.f32 %v633, %v759
        %v834 = vmul.f32 %v682, %v759
        %v835 = vmul.f32 %v636, %v764
        %v836 = vmul.f32 %v685, %v764
        %v837 = vmul.f32 %v638, %v769
        %v838 = vmul.f32 %v687, %v769
        %v839 = vmul.f32 %v641, %v774
        %v840 = vmul.f32 %v690, %v774
        %v841 = vmul.f32 %v643, %v779
        %v842 = vmul.f32 %v692, %v779
        %v843 = vmul.f32 %v646, %v784
        %v844 = vmul.f32 %v695, %v784
        %v845 = vmul.f32 %v648, %v789
        %v846 = vmul.f32 %v697, %v789
        %v847 = vmul.f32 %v651, %v794
        %v848 = vmul.f32 %v700, %v794
        %v849 = vmul.f32 %v653, %v799
        %v850 = vmul.f32 %v702, %v799
        %v851 = vmul.f32 %v656, %v804
        %v852 = vmul.f32 %v705, %v804
        %v853 = vmul.f32 %v658, %v809
        %v854 = vmul.f32 %v707, %v809
        %v855 = vmul.f32 %v661, %v814
        %v856 = vmul.f32 %v710, %v814
        %v857 = vmul.f32 %v663, %v819
        %v858 = vmul.f32 %v712, %v819
        %v859 = vmul.f32 %v666, %v824
        %v860 = vmul.f32 %v715, %v824
        %v861 = vmul.f32 %v668, %v829
        %v862 = vmul.f32 %v717, %v829
        %v863 = vld [vmem:[#allocation2] sm:$0xff]
        %v864 = vld [vmem:[#allocation2 + $0x8] sm:$0xff]
        %v865 = vld [vmem:[#allocation2 + $0x10] sm:$0xff]
        %v866 = vld [vmem:[#allocation2 + $0x18] sm:$0xff]
        %v867 = vld [vmem:[#allocation2 + $0x20] sm:$0xff]
        %v868 = vld [vmem:[#allocation2 + $0x28] sm:$0xff]
        %v869 = vld [vmem:[#allocation2 + $0x30] sm:$0xff]
        %v870 = vld [vmem:[#allocation2 + $0x38] sm:$0xff]
        %v871 = vld [vmem:[#allocation2 + $0x40] sm:$0xff]
        %v872 = vld [vmem:[#allocation2 + $0x48] sm:$0xff]
        %v873 = vld [vmem:[#allocation2 + $0x50] sm:$0xff]
        %v874 = vld [vmem:[#allocation2 + $0x58] sm:$0xff]
        %v875 = vld [vmem:[#allocation2 + $0x60] sm:$0xff]
        %v876 = vld [vmem:[#allocation2 + $0x68] sm:$0xff]
        %v877 = vld [vmem:[#allocation2 + $0x70] sm:$0xff]
        %v878 = vld [vmem:[#allocation2 + $0x78] sm:$0xff]
        %v879 = vpack.c.bf16 %v833, %v831
        %v880 = vpack.c.bf16 %v834, %v832
        %v881 = vpack.c.bf16 %v837, %v835
        %v882 = vpack.c.bf16 %v838, %v836
        %v883 = vpack.c.bf16 %v841, %v839
        %v884 = vpack.c.bf16 %v842, %v840
        %v885 = vpack.c.bf16 %v845, %v843
        %v886 = vpack.c.bf16 %v846, %v844
        %v887 = vpack.c.bf16 %v849, %v847
        %v888 = vpack.c.bf16 %v850, %v848
        %v889 = vpack.c.bf16 %v853, %v851
        %v890 = vpack.c.bf16 %v854, %v852
        %v891 = vpack.c.bf16 %v857, %v855
        %v892 = vpack.c.bf16 %v858, %v856
        %v893 = vpack.c.bf16 %v861, %v859
        %v894 = vpack.c.bf16 %v862, %v860
        %v895 = vld [vmem:[%s396] sm:$0xf]
        %v896 = vld [vmem:[%s396 + $0x4] sm:$0xf]
        %v897 = vld [vmem:[%s396 + $0x8] sm:$0xf]
        %v898 = vld [vmem:[%s396 + $0xc] sm:$0xf]
        %v899 = vld [vmem:[%s396 + $0x10] sm:$0xf]
        %v900 = vld [vmem:[%s396 + $0x14] sm:$0xf]
        %v901 = vld [vmem:[%s396 + $0x18] sm:$0xf]
        %v902 = vld [vmem:[%s396 + $0x1c] sm:$0xf]
        %v903 = vld [vmem:[%s396 + $0x20] sm:$0xf]
        %v904 = vld [vmem:[%s396 + $0x24] sm:$0xf]
        %v905 = vld [vmem:[%s396 + $0x28] sm:$0xf]
        %v906 = vld [vmem:[%s396 + $0x2c] sm:$0xf]
        %v907 = vld [vmem:[%s396 + $0x30] sm:$0xf]
        %v908 = vld [vmem:[%s396 + $0x34] sm:$0xf]
        %v909 = vld [vmem:[%s396 + $0x38] sm:$0xf]
        %v910 = vld [vmem:[%s396 + $0x3c] sm:$0xf]
        %v911 = vld [vmem:[%s396 + $0x40] sm:$0xf]
        %v912 = vld [vmem:[%s396 + $0x44] sm:$0xf]
        %v913 = vld [vmem:[%s396 + $0x48] sm:$0xf]
        %v914 = vld [vmem:[%s396 + $0x4c] sm:$0xf]
        %v915 = vld [vmem:[%s396 + $0x50] sm:$0xf]
        %v916 = vld [vmem:[%s396 + $0x54] sm:$0xf]
        %v917 = vld [vmem:[%s396 + $0x58] sm:$0xf]
        %v918 = vld [vmem:[%s396 + $0x5c] sm:$0xf]
        %v919 = vld [vmem:[%s396 + $0x60] sm:$0xf]
        %v920 = vld [vmem:[%s396 + $0x64] sm:$0xf]
        %v921 = vld [vmem:[%s396 + $0x68] sm:$0xf]
        %v922 = vld [vmem:[%s396 + $0x6c] sm:$0xf]
        %v923 = vld [vmem:[%s396 + $0x70] sm:$0xf]
        %v924 = vld [vmem:[%s396 + $0x74] sm:$0xf]
        %v925 = vld [vmem:[%s396 + $0x78] sm:$0xf]
        %v926 = vld [vmem:[%s396 + $0x7c] sm:$0xf]
        %v959 = vunpack.c.l.b16 %v895
        %v960 = vunpack.c.l.b16 %v896
        %v961 = vunpack.c.l.b16 %v897
        %v962 = vunpack.c.l.b16 %v898
        %v963 = vunpack.c.l.b16 %v899
        %v964 = vunpack.c.l.b16 %v900
        %v965 = vunpack.c.l.b16 %v901
        %v966 = vunpack.c.l.b16 %v902
        %v967 = vunpack.c.l.b16 %v903
        %v968 = vunpack.c.l.b16 %v904
        %v969 = vunpack.c.l.b16 %v905
        %v970 = vunpack.c.l.b16 %v906
        %v971 = vunpack.c.l.b16 %v907
        %v972 = vunpack.c.l.b16 %v908
        %v973 = vunpack.c.l.b16 %v909
        %v974 = vunpack.c.l.b16 %v910
        %v975 = vunpack.c.l.b16 %v911
        %v976 = vunpack.c.l.b16 %v912
        %v977 = vunpack.c.l.b16 %v913
        %v978 = vunpack.c.l.b16 %v914
        %v979 = vunpack.c.l.b16 %v915
        %v980 = vunpack.c.l.b16 %v916
        %v981 = vunpack.c.l.b16 %v917
        %v982 = vunpack.c.l.b16 %v918
        %v983 = vunpack.c.l.b16 %v919
        %v984 = vunpack.c.l.b16 %v920
        %v985 = vunpack.c.l.b16 %v921
        %v986 = vunpack.c.l.b16 %v922
        %v987 = vunpack.c.l.b16 %v923
        %v988 = vunpack.c.l.b16 %v924
        %v989 = vunpack.c.l.b16 %v925
        %v990 = vunpack.c.l.b16 %v926
        %v991 = vpack.c.b16 %v960, %v959
        %v992 = vpack.c.b16 %v962, %v961
        %v993 = vpack.c.b16 %v964, %v963
        %v994 = vpack.c.b16 %v966, %v965
        %v995 = vpack.c.b16 %v968, %v967
        %v996 = vpack.c.b16 %v970, %v969
        %v997 = vpack.c.b16 %v972, %v971
        %v998 = vpack.c.b16 %v974, %v973
        %v999 = vpack.c.b16 %v976, %v975
        %v1000 = vpack.c.b16 %v978, %v977
        %v1001 = vpack.c.b16 %v980, %v979
        %v1002 = vpack.c.b16 %v982, %v981
        %v1003 = vpack.c.b16 %v984, %v983
        %v1004 = vpack.c.b16 %v986, %v985
        %v1005 = vpack.c.b16 %v988, %v987
        %v1006 = vpack.c.b16 %v990, %v989
        %1023 = vmatpush.bf16.msra.mxu0 %v998
        %1024 = vmatpush.bf16.msra.mxu0 %v997
        %1025 = vmatpush.bf16.msra.mxu0 %v996
        %1026 = vmatpush.bf16.msra.mxu0 %v995
        %1027 = vmatpush.bf16.msra.mxu0 %v994
        %1028 = vmatpush.bf16.msra.mxu0 %v993
        %1029 = vmatpush.bf16.msra.mxu0 %v992
        %1030 = vmatpush.bf16.msra.mxu0 %v991
        %1031 = vmatmul.bf16.gmra.mxu0 %v879
        %v1032 = vpop.f32.mrf.mxu0
        %v1033 = vadd.f32 0.0, %v1032
        %v1034 = vpop.f32.mrf.mxu0
        %v1035 = vadd.f32 0.0, %v1034
        %1036 = vmatmul.bf16.gmra.mxu0 %v881
        %v1037 = vpop.f32.mrf.mxu0
        %v1038 = vadd.f32 0.0, %v1037
        %v1039 = vpop.f32.mrf.mxu0
        %v1040 = vadd.f32 0.0, %v1039
        %1041 = vmatmul.bf16.gmra.mxu0 %v883
        %v1042 = vpop.f32.mrf.mxu0
        %v1043 = vadd.f32 0.0, %v1042
        %v1044 = vpop.f32.mrf.mxu0
        %v1045 = vadd.f32 0.0, %v1044
        %1046 = vmatmul.bf16.gmra.mxu0 %v885
        %v1047 = vpop.f32.mrf.mxu0
        %v1048 = vadd.f32 0.0, %v1047
        %v1049 = vpop.f32.mrf.mxu0
        %v1050 = vadd.f32 0.0, %v1049
        %1051 = vmatmul.bf16.gmra.mxu0 %v887
        %v1052 = vpop.f32.mrf.mxu0
        %v1053 = vadd.f32 0.0, %v1052
        %v1054 = vpop.f32.mrf.mxu0
        %v1055 = vadd.f32 0.0, %v1054
        %1056 = vmatmul.bf16.gmra.mxu0 %v889
        %v1057 = vpop.f32.mrf.mxu0
        %v1058 = vadd.f32 0.0, %v1057
        %v1059 = vpop.f32.mrf.mxu0
        %v1060 = vadd.f32 0.0, %v1059
        %1061 = vmatmul.bf16.gmra.mxu0 %v891
        %v1062 = vpop.f32.mrf.mxu0
        %v1063 = vadd.f32 0.0, %v1062
        %v1064 = vpop.f32.mrf.mxu0
        %v1065 = vadd.f32 0.0, %v1064
        %1066 = vmatmul.bf16.gmra.mxu0 %v893
        %v1067 = vpop.f32.mrf.mxu0
        %v1068 = vadd.f32 0.0, %v1067
        %v1069 = vpop.f32.mrf.mxu0
        %v1070 = vadd.f32 0.0, %v1069
        %1071 = vdwg.mxu0
        %1072 = vmatpush.bf16.msra.mxu0 %v1006
        %1073 = vmatpush.bf16.msra.mxu0 %v1005
        %1074 = vmatpush.bf16.msra.mxu0 %v1004
        %1075 = vmatpush.bf16.msra.mxu0 %v1003
        %1076 = vmatpush.bf16.msra.mxu0 %v1002
        %1077 = vmatpush.bf16.msra.mxu0 %v1001
        %1078 = vmatpush.bf16.msra.mxu0 %v1000
        %1079 = vmatpush.bf16.msra.mxu0 %v999
        %1080 = vmatmul.bf16.gmra.mxu0 %v880
        %v1081 = vpop.f32.mrf.mxu0
        %v1082 = vadd.f32 %v1033, %v1081
        %v1083 = vpop.f32.mrf.mxu0
        %v1084 = vadd.f32 %v1035, %v1083
        %1085 = vmatmul.bf16.gmra.mxu0 %v882
        %v1086 = vpop.f32.mrf.mxu0
        %v1087 = vadd.f32 %v1038, %v1086
        %v1088 = vpop.f32.mrf.mxu0
        %v1089 = vadd.f32 %v1040, %v1088
        %1090 = vmatmul.bf16.gmra.mxu0 %v884
        %v1091 = vpop.f32.mrf.mxu0
        %v1092 = vadd.f32 %v1043, %v1091
        %v1093 = vpop.f32.mrf.mxu0
        %v1094 = vadd.f32 %v1045, %v1093
        %1095 = vmatmul.bf16.gmra.mxu0 %v886
        %v1096 = vpop.f32.mrf.mxu0
        %v1097 = vadd.f32 %v1048, %v1096
        %v1098 = vpop.f32.mrf.mxu0
        %v1099 = vadd.f32 %v1050, %v1098
        %1100 = vmatmul.bf16.gmra.mxu0 %v888
        %v1101 = vpop.f32.mrf.mxu0
        %v1102 = vadd.f32 %v1053, %v1101
        %v1103 = vpop.f32.mrf.mxu0
        %v1104 = vadd.f32 %v1055, %v1103
        %1105 = vmatmul.bf16.gmra.mxu0 %v890
        %v1106 = vpop.f32.mrf.mxu0
        %v1107 = vadd.f32 %v1058, %v1106
        %v1108 = vpop.f32.mrf.mxu0
        %v1109 = vadd.f32 %v1060, %v1108
        %1110 = vmatmul.bf16.gmra.mxu0 %v892
        %v1111 = vpop.f32.mrf.mxu0
        %v1112 = vadd.f32 %v1063, %v1111
        %v1113 = vpop.f32.mrf.mxu0
        %v1114 = vadd.f32 %v1065, %v1113
        %1115 = vmatmul.bf16.gmra.mxu0 %v894
        %v1116 = vpop.f32.mrf.mxu0
        %v1117 = vadd.f32 %v1068, %v1116
        %v1118 = vpop.f32.mrf.mxu0
        %v1119 = vadd.f32 %v1070, %v1118
        %1120 = vdwg.mxu0
        %v1121 = vadd.f32 %v863, %v1082
        %v1122 = vadd.f32 %v864, %v1084
        %v1123 = vadd.f32 %v865, %v1087
        %v1124 = vadd.f32 %v866, %v1089
        %v1125 = vadd.f32 %v867, %v1092
        %v1126 = vadd.f32 %v868, %v1094
        %v1127 = vadd.f32 %v869, %v1097
        %v1128 = vadd.f32 %v870, %v1099
        %v1129 = vadd.f32 %v871, %v1102
        %v1130 = vadd.f32 %v872, %v1104
        %v1131 = vadd.f32 %v873, %v1107
        %v1132 = vadd.f32 %v874, %v1109
        %v1133 = vadd.f32 %v875, %v1112
        %v1134 = vadd.f32 %v876, %v1114
        %v1135 = vadd.f32 %v877, %v1117
        %v1136 = vadd.f32 %v878, %v1119
        %1137 = vst [vmem:[#allocation2] sm:$0xff] %v1121
        %1138 = vst [vmem:[#allocation2 + $0x8] sm:$0xff] %v1122
        %1139 = vst [vmem:[#allocation2 + $0x10] sm:$0xff] %v1123
        %1140 = vst [vmem:[#allocation2 + $0x18] sm:$0xff] %v1124
        %1141 = vst [vmem:[#allocation2 + $0x20] sm:$0xff] %v1125
        %1142 = vst [vmem:[#allocation2 + $0x28] sm:$0xff] %v1126
        %1143 = vst [vmem:[#allocation2 + $0x30] sm:$0xff] %v1127
        %1144 = vst [vmem:[#allocation2 + $0x38] sm:$0xff] %v1128
        %1145 = vst [vmem:[#allocation2 + $0x40] sm:$0xff] %v1129
        %1146 = vst [vmem:[#allocation2 + $0x48] sm:$0xff] %v1130
        %1147 = vst [vmem:[#allocation2 + $0x50] sm:$0xff] %v1131
        %1148 = vst [vmem:[#allocation2 + $0x58] sm:$0xff] %v1132
        %1149 = vst [vmem:[#allocation2 + $0x60] sm:$0xff] %v1133
        %1150 = vst [vmem:[#allocation2 + $0x68] sm:$0xff] %v1134
        %1151 = vst [vmem:[#allocation2 + $0x70] sm:$0xff] %v1135
        %1152 = vst [vmem:[#allocation2 + $0x78] sm:$0xff] %v1136
        %p1153 = scmp.eq.s32.totalorder %s24, 1
        // Predicated region
        $region83: #{tpu_custom_call.1} parent=73 // pred_check
          %p1154 = pneg %p1153
        $region84: #{tpu_custom_call.1} parent=73 // pred_check_branch
          %1156 = sbr.rel (%p1154) target = $region86
        $region85: #{tpu_custom_call.1} parent=73 // pred_region
          %v1157 = vld [vmem:[#allocation2] sm:$0xff]
          %v1158 = vld [vmem:[#allocation2 + $0x8] sm:$0xff]
          %v1159 = vld [vmem:[#allocation2 + $0x10] sm:$0xff]
          %v1160 = vld [vmem:[#allocation2 + $0x18] sm:$0xff]
          %v1161 = vld [vmem:[#allocation2 + $0x20] sm:$0xff]
          %v1162 = vld [vmem:[#allocation2 + $0x28] sm:$0xff]
          %v1163 = vld [vmem:[#allocation2 + $0x30] sm:$0xff]
          %v1164 = vld [vmem:[#allocation2 + $0x38] sm:$0xff]
          %v1165 = vld [vmem:[#allocation2 + $0x40] sm:$0xff]
          %v1166 = vld [vmem:[#allocation2 + $0x48] sm:$0xff]
          %v1167 = vld [vmem:[#allocation2 + $0x50] sm:$0xff]
          %v1168 = vld [vmem:[#allocation2 + $0x58] sm:$0xff]
          %v1169 = vld [vmem:[#allocation2 + $0x60] sm:$0xff]
          %v1170 = vld [vmem:[#allocation2 + $0x68] sm:$0xff]
          %v1171 = vld [vmem:[#allocation2 + $0x70] sm:$0xff]
          %v1172 = vld [vmem:[#allocation2 + $0x78] sm:$0xff]
          %v1173 = vld [vmem:[%s4] sm:$0x1]
          %v1175 = vperm.slane %v1173, 0
          %v1177 = vadd.f32 %v1157, %v1175
          %v1178 = vadd.f32 %v1158, %v1175
          %v1179 = vadd.f32 %v1159, %v1175
          %v1180 = vadd.f32 %v1160, %v1175
          %v1181 = vadd.f32 %v1161, %v1175
          %v1182 = vadd.f32 %v1162, %v1175
          %v1183 = vadd.f32 %v1163, %v1175
          %v1184 = vadd.f32 %v1164, %v1175
          %v1185 = vadd.f32 %v1165, %v1175
          %v1186 = vadd.f32 %v1166, %v1175
          %v1187 = vadd.f32 %v1167, %v1175
          %v1188 = vadd.f32 %v1168, %v1175
          %v1189 = vadd.f32 %v1169, %v1175
          %v1190 = vadd.f32 %v1170, %v1175
          %v1191 = vadd.f32 %v1171, %v1175
          %v1192 = vadd.f32 %v1172, %v1175
          %1193 = vst [vmem:[%s378] sm:$0xff] %v1177
          %1194 = vst [vmem:[%s378 + $0x8] sm:$0xff] %v1178
          %1195 = vst [vmem:[%s378 + $0x10] sm:$0xff] %v1179
          %1196 = vst [vmem:[%s378 + $0x18] sm:$0xff] %v1180
          %1197 = vst [vmem:[%s378 + $0x20] sm:$0xff] %v1181
          %1198 = vst [vmem:[%s378 + $0x28] sm:$0xff] %v1182
          %1199 = vst [vmem:[%s378 + $0x30] sm:$0xff] %v1183
          %1200 = vst [vmem:[%s378 + $0x38] sm:$0xff] %v1184
          %1201 = vst [vmem:[%s378 + $0x40] sm:$0xff] %v1185
          %1202 = vst [vmem:[%s378 + $0x48] sm:$0xff] %v1186
          %1203 = vst [vmem:[%s378 + $0x50] sm:$0xff] %v1187
          %1204 = vst [vmem:[%s378 + $0x58] sm:$0xff] %v1188
          %1205 = vst [vmem:[%s378 + $0x60] sm:$0xff] %v1189
          %1206 = vst [vmem:[%s378 + $0x68] sm:$0xff] %v1190
          %1207 = vst [vmem:[%s378 + $0x70] sm:$0xff] %v1191
          %1208 = vst [vmem:[%s378 + $0x78] sm:$0xff] %v1192
        $region86: #{tpu_custom_call.1} parent=73 // pred_fallthru
          _
        %s1209 = sand.u32 %s164, 1
        %s1210 = scalar_lea.sflag [#allocation5], %s1209
        %s1211 = sand.u32 %s164, 1
        %s1212 = smul.addr %s1211, 128
        %s1213 = scalar_lea.vmem [#allocation4], %s1212
        // Predicated region
        $region87: #{tpu_custom_call.1} parent=73 // pred_check
          %p1214 = pneg %p174
        $region88: #{tpu_custom_call.1} parent=73 // pred_check_branch
          %1216 = sbr.rel (%p1214) target = $region90
        $region89: #{tpu_custom_call.1} parent=73 // pred_region
          %s1217 = smul.u32 16, %s23
          %1219 = vsyncadd %s1210, 0
          %s1220 = smul.addr %s1217, 8
          %s1221 = scalar_lea.hbm %s5, %s1220
          %s1222 = sshll.u32 %s1213, 4
          %s1223 = int_to_ptr.vmem [resolvable:$true] %s1222
          %s1224 = sshll.u32 %s1221, 4
          %s1225 = int_to_ptr.hbm [resolvable:$true] %s1224
          %1230 = dma.vmem_to_hbm [thread:$0]  %s1223, 2048, %s1225, %s1210, 128, 128, 8
        $region90: #{tpu_custom_call.1} parent=73 // pred_fallthru
          _
      $region74: #{tpu_custom_call.1} parent=5 // pred_fallthru
        _
      %p1231 = scmp.le.s32.totalorder 2, %s14
      // Predicated region
      $region91: #{tpu_custom_call.1} parent=5 // pred_check
        %p1232 = pneg %p1231
      $region92: #{tpu_custom_call.1} parent=5 // pred_check_branch
        %1234 = sbr.rel (%p1232) target = $region94
      $region93: #{tpu_custom_call.1} parent=5 // pred_region
        %s1235 = ssub.s32 %s14, 2
        // Predicated region
        $region95: #{tpu_custom_call.1} parent=93 // pred_check
          %p1236 = pneg %p180
        $region96: #{tpu_custom_call.1} parent=93 // pred_check_branch
          %1238 = sbr.rel (%p1236) target = $region98
        $region97: #{tpu_custom_call.1} parent=93 // pred_region
          %s1239 = sand.u32 %s165, 1
          %s1240 = scalar_lea.sflag [#allocation5], %s1239
          %s1241 = sand.u32 %s165, 1
          %s1242 = smul.addr %s1241, 128
          %s1243 = scalar_lea.vmem [#allocation4], %s1242
          %1245 = dma.done %s1240, 2048
        $region98: #{tpu_custom_call.1} parent=93 // pred_fallthru
          _
      $region94: #{tpu_custom_call.1} parent=5 // pred_fallthru
        _
    $region6: #{tpu_custom_call.1} parent=1 // loop_footer
      %s18 = sadd.s32 1, %s14
    $region7: #{tpu_custom_call.1} parent=1 // loop_footer_branch
      %13 = sbr.rel target = $region3
    $region8: #{tpu_custom_call.1} parent=1 // loop_exit
      _
    %1246 = vsyncpa [#allocation5], 1
    %s1247 = scalar_lea.sflag [#allocation5], 1
    %1248 = vsyncpa %s1247, 1

</llo_original>
